<compile_context>
chip_gen: v5e
topology: v5e:2x2
jax: 0.10.0
libtpu: 0.0.40
codegen_flags: <defaults>
</compile_context>

<pallas_src>
import math

import jax
import jax.numpy as jnp
from jax.experimental import pallas as pl
from jax.experimental.pallas import tpu as pltpu


def _mse_partial_kernel(x1_ref, x2_ref, o_ref):
    j = pl.program_id(1)  # reduction axis (last, "arbitrary")

    @pl.when(j == 0)
    def _():
        o_ref[...] = jnp.zeros_like(o_ref)

    # Difference in the input dtype; widen to f32 for square + accumulate.
    d = (x1_ref[...] - x2_ref[...]).astype(jnp.float32)
    sq = d * d
    br, c = sq.shape
    # Fold (block_rows, C) down onto the (8, C) vreg-aligned accumulator with
    # elementwise adds only (no cross-lane reduce on the per-step path).
    o_ref[...] += sq.reshape(br // 8, 8, c).sum(axis=0)[None, :, :]


def mse_flattened_loss(x1, x2, *, lanes=512, target_block_bytes=4 << 20,
                       num_parts=2):
    """mean((x1 - x2)**2) over all elements, matching MSEFlattenedLoss."""
    assert x1.shape == x2.shape, "inputs must have identical shapes"
    total = math.prod(x1.shape)
    itemsize = jnp.dtype(x1.dtype).itemsize

    c = lanes  # multiple of 128 -> full-rate, unmasked vector loads/stores

    # Rows of the (R, C) view needed to hold every element.
    rows_needed = pl.cdiv(total, c)

    # Block rows: large enough to amortize grid-step overhead, but no larger
    # than one partition's worth of rows (rounded to a multiple of 8 sublanes).
    block_rows = max(8, (target_block_bytes // (c * itemsize)) // 8 * 8)
    rows_per_part = pl.cdiv(rows_needed, num_parts)
    rows_per_part = pl.cdiv(rows_per_part, 8) * 8
    block_rows = min(block_rows, rows_per_part)

    chunk = num_parts * block_rows
    r = pl.cdiv(rows_needed, chunk) * chunk
    n_blocks = r // chunk  # reduction steps per partition

    padded_total = r * c
    x1f = x1.reshape(-1)
    x2f = x2.reshape(-1)
    if padded_total != total:
        pad = padded_total - total
        # Zero-pad both inputs: (0 - 0)^2 adds nothing to the sum.
        x1f = jnp.pad(x1f, (0, pad))
        x2f = jnp.pad(x2f, (0, pad))
    x1r = x1f.reshape(r, c)
    x2r = x2f.reshape(r, c)

    cost = pl.CostEstimate(
        flops=3 * total,
        transcendentals=0,
        bytes_accessed=2 * padded_total * itemsize + num_parts * 8 * c * 4,
    )

    partials = pl.pallas_call(
        _mse_partial_kernel,
        out_shape=jax.ShapeDtypeStruct((num_parts, 8, c), jnp.float32),
        grid_spec=pltpu.PrefetchScalarGridSpec(
            num_scalar_prefetch=0,
            grid=(num_parts, n_blocks),
            in_specs=[
                pl.BlockSpec((block_rows, c),
                             lambda p, j: (p * n_blocks + j, 0)),
                pl.BlockSpec((block_rows, c),
                             lambda p, j: (p * n_blocks + j, 0)),
            ],
            out_specs=pl.BlockSpec((1, 8, c), lambda p, j: (p, 0, 0)),
        ),
        compiler_params=pltpu.CompilerParams(
            dimension_semantics=("parallel", "arbitrary"),
            vmem_limit_bytes=32 << 20,
        ),
        cost_estimate=cost,
    )(x1r, x2r)

    # Tiny final reduction (2 * 8 * C elements) + mean in plain JAX.
    return jnp.sum(partials) / jnp.float32(total)


if __name__ == "__main__":
    key = jax.random.PRNGKey(0)
    k1, k2 = jax.random.split(key)
    # NCHW inputs, small shapes.
    x1 = jax.random.normal(k1, (2, 4, 16, 16), dtype=jnp.float32)
    x2 = jax.random.normal(k2, (2, 4, 16, 16), dtype=jnp.float32)

    loss = mse_flattened_loss(x1, x2)
    jax.block_until_ready(loss)

    # Reference check in plain JAX.
    ref = jnp.mean((x1.reshape(2, -1) - x2.reshape(2, -1)) ** 2)
    assert jnp.allclose(loss, ref, rtol=1e-6, atol=1e-6), (loss, ref)

    print("KERNEL_OK")
</pallas_src>

<mosaic_0001>
module attributes {stable_mosaic.version = 11 : i64} {
  func.func @_mse_partial_kernel(%arg0: i32, %arg1: i32, %arg2: memref<8x512xf32, #tpu.memory_space<vmem>>, %arg3: memref<8x512xf32, #tpu.memory_space<vmem>>, %arg4: memref<1x8x512xf32, #tpu.memory_space<vmem>>) attributes {dimension_semantics = [#tpu.dimension_semantics<parallel>, #tpu.dimension_semantics<arbitrary>], iteration_bounds = array<i64: 2, 1>, scalar_prefetch = 0 : i64, scratch_operands = 0 : i64, tpu.core_type = #tpu.core_type<tc>, window_params = [{transform_indices = @transform_0, window_bounds = array<i64: 8, 512>}, {transform_indices = @transform_1, window_bounds = array<i64: 8, 512>}, {transform_indices = @transform_2, window_bounds = array<i64: 1, 8, 512>}]} {
    %c0_i32 = arith.constant 0 : i32
    %0 = arith.cmpi eq, %arg1, %c0_i32 : i32
    %1 = arith.extui %0 : i1 to i32
    %c0_i32_0 = arith.constant 0 : i32
    %2 = arith.cmpi ne, %1, %c0_i32_0 : i32
    scf.if %2 {
      %cst_10 = arith.constant 0.000000e+00 : f32
      %13 = vector.broadcast %cst_10 : f32 to vector<1x8x512xf32>
      %c0_11 = arith.constant 0 : index
      %c0_12 = arith.constant 0 : index
      %c0_13 = arith.constant 0 : index
      %14 = vector.load %arg4[%c0_11, %c0_12, %c0_13] : memref<1x8x512xf32, #tpu.memory_space<vmem>>, vector<1x8x512xf32>
      tpu.vector_store %arg4[%c0_11, %c0_12, %c0_13], %13 {strides = array<i32>} : memref<1x8x512xf32, #tpu.memory_space<vmem>>, vector<1x8x512xf32>,
    } else {
    }
    %c0 = arith.constant 0 : index
    %c0_1 = arith.constant 0 : index
    %3 = vector.load %arg2[%c0, %c0_1] : memref<8x512xf32, #tpu.memory_space<vmem>>, vector<8x512xf32>
    %c0_2 = arith.constant 0 : index
    %c0_3 = arith.constant 0 : index
    %4 = vector.load %arg3[%c0_2, %c0_3] : memref<8x512xf32, #tpu.memory_space<vmem>>, vector<8x512xf32>
    %5 = arith.subf %3, %4 : vector<8x512xf32>
    %6 = arith.mulf %5, %5 : vector<8x512xf32>
    %c0_4 = arith.constant 0 : index
    %c0_5 = arith.constant 0 : index
    %c0_6 = arith.constant 0 : index
    %7 = vector.load %arg4[%c0_4, %c0_5, %c0_6] : memref<1x8x512xf32, #tpu.memory_space<vmem>>, vector<1x8x512xf32>
    %8 = vector.shape_cast %6 : vector<8x512xf32> to vector<1x8x512xf32>
    %cst = arith.constant dense<0.000000e+00> : vector<8x512xf32>
    %9 = vector.multi_reduction <add>, %8, %cst [0] : vector<1x8x512xf32> to vector<8x512xf32>
    %10 = vector.shape_cast %9 : vector<8x512xf32> to vector<1x8x512xf32>
    %11 = arith.addf %7, %10 : vector<1x8x512xf32>
    %c0_7 = arith.constant 0 : index
    %c0_8 = arith.constant 0 : index
    %c0_9 = arith.constant 0 : index
    %12 = vector.load %arg4[%c0_7, %c0_8, %c0_9] : memref<1x8x512xf32, #tpu.memory_space<vmem>>, vector<1x8x512xf32>
    tpu.vector_store %arg4[%c0_7, %c0_8, %c0_9], %11 {strides = array<i32>} : memref<1x8x512xf32, #tpu.memory_space<vmem>>, vector<1x8x512xf32>,
    return
  }
  func.func @transform_0(%arg0: i32, %arg1: i32) -> (i32, i32) {
    %c1_i32 = arith.constant 1 : i32
    %0 = arith.muli %arg0, %c1_i32 : i32
    %1 = arith.addi %0, %arg1 : i32
    %c0_i32 = arith.constant 0 : i32
    %c0_i32_0 = arith.constant 0 : i32
    return %1, %c0_i32 : i32, i32
  }
  func.func @transform_1(%arg0: i32, %arg1: i32) -> (i32, i32) {
    %c1_i32 = arith.constant 1 : i32
    %0 = arith.muli %arg0, %c1_i32 : i32
    %1 = arith.addi %0, %arg1 : i32
    %c0_i32 = arith.constant 0 : i32
    %c0_i32_0 = arith.constant 0 : i32
    return %1, %c0_i32 : i32, i32
  }
  func.func @transform_2(%arg0: i32, %arg1: i32) -> (i32, i32, i32) {
    %c0_i32 = arith.constant 0 : i32
    %c0_i32_0 = arith.constant 0 : i32
    %c0_i32_1 = arith.constant 0 : i32
    return %arg0, %c0_i32, %c0_i32_0 : i32, i32, i32
  }
}

</mosaic_0001>

<llo_original>
// kernel: tpu_custom_call.1
$region0: #{tpu_custom_call.1}
  #allocation0 [shape = 'u32[]', space=smem, size = 0x4, offset = 0x4, fixed_abs, tag = 'smem constant byte address 0x4 - core index']
  #allocation1 [shape = 'u32[72,128]{1,0:T(1,128)}', space=vmem, size = 0x9000, scoped, tag = 'internal scratch']
  %s0 = inlined_call_operand.hbm [shape: f32[16,512], index: 0, kind: input, shape index: {}]
  %s1 = inlined_call_operand.hbm [shape: f32[16,512], index: 1, kind: input, shape index: {}]
  %s2 = inlined_call_operand.hbm [shape: f32[2,8,512], index: 2, kind: output, shape index: {}]
  %s3 = sld [smem:[#allocation0]]
  $region53: #{tpu_custom_call.1} parent=0
    _
  %s5 = ssub.s32 1, %s3
  %s6 = scalar_select 0, %s5, %s3
  $region1: #{tpu_custom_call.1} parent=0
    #allocation2 [shape = 'u8[32768]{0}', space=vmem, size = 0x8000, scoped, tag = 'input window, operand 0']
    #allocation3 [shape = 's32[2]{0}', space=sflag, size = 0x8, scoped, tag = 'scoped memory for tpu_custom_call.1']
    #allocation4 [shape = 's32[2]{0}', space=sflag, size = 0x8, scoped, tag = 'scoped memory for tpu_custom_call.1']
    #allocation5 [shape = 'u8[32768]{0}', space=vmem, size = 0x8000, scoped, tag = 'input window, operand 1']
    #allocation6 [shape = 's32[2]{0}', space=sflag, size = 0x8, scoped, tag = 'scoped memory for tpu_custom_call.1']
    #allocation7 [shape = 'u8[32768]{0}', space=vmem, size = 0x8000, scoped, tag = 'output window, operand 0']
    %7 = vsyncpa [#allocation3], 0
    %s8 = scalar_lea.sflag [#allocation3], 1
    %9 = vsyncpa %s8, 0
    %10 = vsyncpa [#allocation6], 0
    %s11 = scalar_lea.sflag [#allocation6], 1
    %12 = vsyncpa %s11, 0
    %13 = vsyncpa [#allocation4], 0
    %s14 = scalar_lea.sflag [#allocation4], 1
    %15 = vsyncpa %s14, 0
    loop: start=0, step=1, limit=4
    $region2: #{tpu_custom_call.1} parent=1 // loop_pre_header
      _
    $region3: #{tpu_custom_call.1} parent=1 // loop_header
      %s17 = sphi 0, %s21
      %p18 = scmp.ge.s32.totalorder %s17, 4
      %s24 = sphi 0, %s36
      %s25 = sphi 0, %s32
      %s26 = sphi 0, %s24
      %s27 = sphi 0, %s25
      %s28 = sphi 0, %s26
      %s29 = sphi 0, %s27
      %s41 = sphi 0, %s43
      %s44 = sphi 0, %s41
      %s45 = sphi 0, %s44
      %s61 = sphi 0, %s45
      %s69 = sphi 0, %s71
      %s72 = sphi 0, %s69
      %s73 = sphi 0, %s72
      %s89 = sphi 0, %s73
      %s95 = sphi 0, %s97
      %s98 = sphi 0, %s95
      %s99 = sphi 0, %s98
      %s115 = sphi 0, %s99
    $region4: #{tpu_custom_call.1} parent=1 // loop_header_branch
      %20 = sbr.rel (%p18) target = $region8
    $region5: #{tpu_custom_call.1} parent=1 // loop_body
      %s22 = ssub.s32 %s17, 1
      %s23 = ssub.s32 %s17, 2
      %s30 = sadd.s32 1, %s25
      %p31 = scmp.ge.s32.totalorder %s30, 1
      %s32 = scalar_select %p31, 0, %s30
      %s33 = sadd.s32 1, %s24
      %s34 = scalar_select %p31, %s33, %s24
      %p35 = scmp.ge.s32.totalorder %s34, 2
      %s36 = scalar_select %p35, 0, %s34
      %s37 = sadd.s32 %s24, %s25
      %s38 = sadd.s32 %s36, %s32
      %s39 = ssub.s32 %s37, %s38
      %p40 = scmp.eq.s32.totalorder %s39, 0
      %s42 = sadd.s32 %s41, 1
      %s43 = scalar_select %p40, %s41, %s42
      %p46 = pneg %p40
      %p47 = scmp.eq.s32.totalorder %s17, 1
      %p48 = por %p46, %p47
      %p49 = scmp.ne.s32.totalorder %s41, %s44
      %p50 = scmp.eq.s32.totalorder %s17, 0
      %p51 = por %p49, %p50
      %p52 = scmp.ne.s32.totalorder %s41, %s44
      %p53 = scmp.eq.s32.totalorder %s22, 1
      %p54 = por %p52, %p53
      %p55 = scmp.ne.s32.totalorder %s44, %s45
      %p56 = scmp.eq.s32.totalorder %s22, 0
      %p57 = por %p55, %p56
      %p58 = scmp.ne.s32.totalorder %s44, %s45
      %p59 = scmp.eq.s32.totalorder %s23, 1
      %p60 = por %p58, %p59
      %p62 = scmp.ne.s32.totalorder %s45, %s61
      %p63 = scmp.eq.s32.totalorder %s23, 0
      %p64 = por %p62, %p63
      %s65 = sadd.s32 %s24, %s25
      %s66 = sadd.s32 %s36, %s32
      %s67 = ssub.s32 %s65, %s66
      %p68 = scmp.eq.s32.totalorder %s67, 0
      %s70 = sadd.s32 %s69, 1
      %s71 = scalar_select %p68, %s69, %s70
      %p74 = pneg %p68
      %p75 = scmp.eq.s32.totalorder %s17, 1
      %p76 = por %p74, %p75
      %p77 = scmp.ne.s32.totalorder %s69, %s72
      %p78 = scmp.eq.s32.totalorder %s17, 0
      %p79 = por %p77, %p78
      %p80 = scmp.ne.s32.totalorder %s69, %s72
      %p81 = scmp.eq.s32.totalorder %s22, 1
      %p82 = por %p80, %p81
      %p83 = scmp.ne.s32.totalorder %s72, %s73
      %p84 = scmp.eq.s32.totalorder %s22, 0
      %p85 = por %p83, %p84
      %p86 = scmp.ne.s32.totalorder %s72, %s73
      %p87 = scmp.eq.s32.totalorder %s23, 1
      %p88 = por %p86, %p87
      %p90 = scmp.ne.s32.totalorder %s73, %s89
      %p91 = scmp.eq.s32.totalorder %s23, 0
      %p92 = por %p90, %p91
      %s93 = ssub.s32 %s24, %s36
      %p94 = scmp.eq.s32.totalorder %s93, 0
      %s96 = sadd.s32 %s95, 1
      %s97 = scalar_select %p94, %s95, %s96
      %p100 = pneg %p94
      %p101 = scmp.eq.s32.totalorder %s17, 1
      %p102 = por %p100, %p101
      %p103 = scmp.ne.s32.totalorder %s95, %s98
      %p104 = scmp.eq.s32.totalorder %s17, 0
      %p105 = por %p103, %p104
      %p106 = scmp.ne.s32.totalorder %s95, %s98
      %p107 = scmp.eq.s32.totalorder %s22, 1
      %p108 = por %p106, %p107
      %p109 = scmp.ne.s32.totalorder %s98, %s99
      %p110 = scmp.eq.s32.totalorder %s22, 0
      %p111 = por %p109, %p110
      %p112 = scmp.ne.s32.totalorder %s98, %s99
      %p113 = scmp.eq.s32.totalorder %s23, 1
      %p114 = por %p112, %p113
      %p116 = scmp.ne.s32.totalorder %s99, %s115
      %p117 = scmp.eq.s32.totalorder %s23, 0
      %p118 = por %p116, %p117
      %p119 = scmp.le.s32.totalorder 1, %s17
      %p120 = scmp.lt.s32.totalorder %s17, 3
      %p121 = pnand %p119, %p120
      %p122 = pneg %p121
      // Predicated region
      $region9: #{tpu_custom_call.1} parent=5 // pred_check
        _
      $region10: #{tpu_custom_call.1} parent=5 // pred_check_branch
        %124 = sbr.rel (%p121) target = $region12
      $region11: #{tpu_custom_call.1} parent=5 // pred_region
        %s125 = ssub.s32 %s17, 1
      $region12: #{tpu_custom_call.1} parent=5 // pred_fallthru
        _
      %p126 = scmp.lt.s32.totalorder %s17, 2
      // Predicated region
      $region13: #{tpu_custom_call.1} parent=5 // pred_check
        %p127 = pneg %p126
      $region14: #{tpu_custom_call.1} parent=5 // pred_check_branch
        %129 = sbr.rel (%p127) target = $region16
      $region15: #{tpu_custom_call.1} parent=5 // pred_region
        // Predicated region
        $region17: #{tpu_custom_call.1} parent=15 // pred_check
          %p130 = pneg %p51
        $region18: #{tpu_custom_call.1} parent=15 // pred_check_branch
          %132 = sbr.rel (%p130) target = $region20
        $region19: #{tpu_custom_call.1} parent=15 // pred_region
          %s133 = sand.u32 %s41, 1
          %s134 = scalar_lea.sflag [#allocation3], %s133
          %s135 = sand.u32 %s41, 1
          %s136 = smul.addr %s135, 32
          %s137 = scalar_lea.vmem [#allocation2], %s136
          %s138 = sadd.s32 %s24, %s25
          %140 = vsyncadd %s134, 0
          %s141 = smul.addr %s138, 4
          %s142 = smul.addr %s141, 8
          %s143 = scalar_lea.hbm %s0, %s142
          %s145 = sshll.u32 %s143, 4
          %s146 = int_to_ptr.hbm [resolvable:$true] %s145
          %s147 = sshll.u32 %s137, 4
          %s148 = int_to_ptr.vmem [resolvable:$true] %s147
          %150 = dma.hbm_to_vmem [thread:$0]  %s146, 512, %s148, %s134
        $region20: #{tpu_custom_call.1} parent=15 // pred_fallthru
          _
        // Predicated region
        $region21: #{tpu_custom_call.1} parent=15 // pred_check
          %p151 = pneg %p79
        $region22: #{tpu_custom_call.1} parent=15 // pred_check_branch
          %153 = sbr.rel (%p151) target = $region24
        $region23: #{tpu_custom_call.1} parent=15 // pred_region
          %s154 = sand.u32 %s69, 1
          %s155 = scalar_lea.sflag [#allocation6], %s154
          %s156 = sand.u32 %s69, 1
          %s157 = smul.addr %s156, 32
          %s158 = scalar_lea.vmem [#allocation5], %s157
          %s159 = sadd.s32 %s24, %s25
          %161 = vsyncadd %s155, 0
          %s162 = smul.addr %s159, 4
          %s163 = smul.addr %s162, 8
          %s164 = scalar_lea.hbm %s1, %s163
          %s166 = sshll.u32 %s164, 4
          %s167 = int_to_ptr.hbm [resolvable:$true] %s166
          %s168 = sshll.u32 %s158, 4
          %s169 = int_to_ptr.vmem [resolvable:$true] %s168
          %171 = dma.hbm_to_vmem [thread:$0]  %s167, 512, %s169, %s155
        $region24: #{tpu_custom_call.1} parent=15 // pred_fallthru
          _
      $region16: #{tpu_custom_call.1} parent=5 // pred_fallthru
        _
      %p172 = scmp.le.s32.totalorder 1, %s17
      %p173 = scmp.lt.s32.totalorder %s17, 3
      %p174 = pnand %p172, %p173
      %p175 = pneg %p174
      // Predicated region
      $region25: #{tpu_custom_call.1} parent=5 // pred_check
        _
      $region26: #{tpu_custom_call.1} parent=5 // pred_check_branch
        %177 = sbr.rel (%p174) target = $region28
      $region27: #{tpu_custom_call.1} parent=5 // pred_region
        %s178 = ssub.s32 %s17, 1
        %s179 = sand.u32 %s44, 1
        %s180 = scalar_lea.sflag [#allocation3], %s179
        %s181 = sand.u32 %s44, 1
        %s182 = smul.addr %s181, 32
        %s183 = scalar_lea.vmem [#allocation2], %s182
        // Predicated region
        $region29: #{tpu_custom_call.1} parent=27 // pred_check
          %p184 = pneg %p57
        $region30: #{tpu_custom_call.1} parent=27 // pred_check_branch
          %186 = sbr.rel (%p184) target = $region32
        $region31: #{tpu_custom_call.1} parent=27 // pred_region
          %188 = dma.done %s180, 512
        $region32: #{tpu_custom_call.1} parent=27 // pred_fallthru
          _
        %s189 = sand.u32 %s72, 1
        %s190 = scalar_lea.sflag [#allocation6], %s189
        %s191 = sand.u32 %s72, 1
        %s192 = smul.addr %s191, 32
        %s193 = scalar_lea.vmem [#allocation5], %s192
        // Predicated region
        $region33: #{tpu_custom_call.1} parent=27 // pred_check
          %p194 = pneg %p85
        $region34: #{tpu_custom_call.1} parent=27 // pred_check_branch
          %196 = sbr.rel (%p194) target = $region36
        $region35: #{tpu_custom_call.1} parent=27 // pred_region
          %198 = dma.done %s190, 512
        $region36: #{tpu_custom_call.1} parent=27 // pred_fallthru
          _
        %s199 = sand.u32 %s44, 1
        %s200 = scalar_lea.sflag [#allocation3], %s199
        %s201 = sand.u32 %s44, 1
        %s202 = smul.addr %s201, 32
        %s203 = scalar_lea.vmem [#allocation2], %s202
        %p204 = pneg %p57
        %p205 = pneg %p54
        %s206 = sand.u32 %s72, 1
        %s207 = scalar_lea.sflag [#allocation6], %s206
        %s208 = sand.u32 %s72, 1
        %s209 = smul.addr %s208, 32
        %s210 = scalar_lea.vmem [#allocation5], %s209
        %p211 = pneg %p85
        %p212 = pneg %p82
        %p213 = pneg %p111
        %p214 = pneg %p108
        %s215 = sand.u32 %s98, 1
        %s216 = scalar_lea.sflag [#allocation4], %s215
        %s217 = sand.u32 %s98, 1
        %s218 = smul.addr %s217, 32
        %s219 = scalar_lea.vmem [#allocation7], %s218
        %s220 = sadd.s32 %s26, %s27
        %s221 = sadd.s32 %s26, %s27
        %p222 = scmp.eq.s32.totalorder %s27, 0
        // Predicated region
        $region37: #{tpu_custom_call.1} parent=27 // pred_check
          %p223 = pneg %p222
        $region38: #{tpu_custom_call.1} parent=27 // pred_check_branch
          %225 = sbr.rel (%p223) target = $region40
        $region39: #{tpu_custom_call.1} parent=27 // pred_region
          %226 = vst [vmem:[%s219] sm:$0xff] 0.0
          %227 = vst [vmem:[%s219 + $0x8] sm:$0xff] 0.0
          %228 = vst [vmem:[%s219 + $0x10] sm:$0xff] 0.0
          %229 = vst [vmem:[%s219 + $0x18] sm:$0xff] 0.0
        $region40: #{tpu_custom_call.1} parent=27 // pred_fallthru
          _
        %v230 = vld [vmem:[%s183] sm:$0xff]
        %v231 = vld [vmem:[%s183 + $0x8] sm:$0xff]
        %v232 = vld [vmem:[%s183 + $0x10] sm:$0xff]
        %v233 = vld [vmem:[%s183 + $0x18] sm:$0xff]
        %v234 = vld [vmem:[%s193] sm:$0xff]
        %v235 = vld [vmem:[%s193 + $0x8] sm:$0xff]
        %v236 = vld [vmem:[%s193 + $0x10] sm:$0xff]
        %v237 = vld [vmem:[%s193 + $0x18] sm:$0xff]
        %v238 = vsub.f32 %v230, %v234
        %v239 = vsub.f32 %v231, %v235
        %v240 = vsub.f32 %v232, %v236
        %v241 = vsub.f32 %v233, %v237
        %v242 = vmul.f32 %v238, %v238
        %v243 = vmul.f32 %v239, %v239
        %v244 = vmul.f32 %v240, %v240
        %v245 = vmul.f32 %v241, %v241
        %v246 = vld [vmem:[%s219] sm:$0xff]
        %v247 = vld [vmem:[%s219 + $0x8] sm:$0xff]
        %v248 = vld [vmem:[%s219 + $0x10] sm:$0xff]
        %v249 = vld [vmem:[%s219 + $0x18] sm:$0xff]
        %v250 = vadd.f32 %v242, 0.0
        %v251 = vadd.f32 %v243, 0.0
        %v252 = vadd.f32 %v244, 0.0
        %v253 = vadd.f32 %v245, 0.0
        %v254 = vadd.f32 %v246, %v250
        %v255 = vadd.f32 %v247, %v251
        %v256 = vadd.f32 %v248, %v252
        %v257 = vadd.f32 %v249, %v253
        %258 = vst [vmem:[%s219] sm:$0xff] %v254
        %259 = vst [vmem:[%s219 + $0x8] sm:$0xff] %v255
        %260 = vst [vmem:[%s219 + $0x10] sm:$0xff] %v256
        %261 = vst [vmem:[%s219 + $0x18] sm:$0xff] %v257
        %s262 = sand.u32 %s98, 1
        %s263 = scalar_lea.sflag [#allocation4], %s262
        %s264 = sand.u32 %s98, 1
        %s265 = smul.addr %s264, 32
        %s266 = scalar_lea.vmem [#allocation7], %s265
        // Predicated region
        $region41: #{tpu_custom_call.1} parent=27 // pred_check
          %p267 = pneg %p108
        $region42: #{tpu_custom_call.1} parent=27 // pred_check_branch
          %269 = sbr.rel (%p267) target = $region44
        $region43: #{tpu_custom_call.1} parent=27 // pred_region
          %271 = vsyncadd %s263, 0
          %s272 = smul.addr %s26, 4
          %s273 = smul.addr %s272, 8
          %s274 = scalar_lea.hbm %s2, %s273
          %s276 = sshll.u32 %s266, 4
          %s277 = int_to_ptr.vmem [resolvable:$true] %s276
          %s278 = sshll.u32 %s274, 4
          %s279 = int_to_ptr.hbm [resolvable:$true] %s278
          %281 = dma.vmem_to_hbm [thread:$0]  %s277, 512, %s279, %s263
        $region44: #{tpu_custom_call.1} parent=27 // pred_fallthru
          _
      $region28: #{tpu_custom_call.1} parent=5 // pred_fallthru
        _
      %p282 = scmp.le.s32.totalorder 2, %s17
      // Predicated region
      $region45: #{tpu_custom_call.1} parent=5 // pred_check
        %p283 = pneg %p282
      $region46: #{tpu_custom_call.1} parent=5 // pred_check_branch
        %285 = sbr.rel (%p283) target = $region48
      $region47: #{tpu_custom_call.1} parent=5 // pred_region
        %s286 = ssub.s32 %s17, 2
        // Predicated region
        $region49: #{tpu_custom_call.1} parent=47 // pred_check
          %p287 = pneg %p114
        $region50: #{tpu_custom_call.1} parent=47 // pred_check_branch
          %289 = sbr.rel (%p287) target = $region52
        $region51: #{tpu_custom_call.1} parent=47 // pred_region
          %s290 = sand.u32 %s99, 1
          %s291 = scalar_lea.sflag [#allocation4], %s290
          %s292 = sand.u32 %s99, 1
          %s293 = smul.addr %s292, 32
          %s294 = scalar_lea.vmem [#allocation7], %s293
          %296 = dma.done %s291, 512
        $region52: #{tpu_custom_call.1} parent=47 // pred_fallthru
          _
      $region48: #{tpu_custom_call.1} parent=5 // pred_fallthru
        _
    $region6: #{tpu_custom_call.1} parent=1 // loop_footer
      %s21 = sadd.s32 1, %s17
    $region7: #{tpu_custom_call.1} parent=1 // loop_footer_branch
      %16 = sbr.rel target = $region3
    $region8: #{tpu_custom_call.1} parent=1 // loop_exit
      _
    %297 = vsyncpa [#allocation3], 1
    %s298 = scalar_lea.sflag [#allocation3], 1
    %299 = vsyncpa %s298, 1
    %300 = vsyncpa [#allocation6], 1
    %s301 = scalar_lea.sflag [#allocation6], 1
    %302 = vsyncpa %s301, 1
    %303 = vsyncpa [#allocation4], 1
    %s304 = scalar_lea.sflag [#allocation4], 1
    %305 = vsyncpa %s304, 1

</llo_original>
